<compile_context>
chip_gen: v6e
topology: v6e:2x2x1
jax: 0.10.0
libtpu: 0.0.40
codegen_flags: <defaults>
</compile_context>

<pallas_src>
import functools

import jax
import jax.numpy as jnp
from jax.experimental import pallas as pl
from jax.experimental.pallas import tpu as pltpu

_BN_EPS = 1e-5                      # nn.BatchNorm1d default eps


def _vmem_capacity_bytes():
    try:
        cap = int(pltpu.get_tpu_info().vmem_capacity_bytes)
        return cap if cap > 0 else 64 << 20
    except Exception:               # pragma: no cover - conservative default (v7x per-TC)
        return 64 << 20


_VMEM_CAP = _vmem_capacity_bytes()
_FUSED_BUDGET = _VMEM_CAP // 4      # resident-bytes budget for the single-kernel path
_VMEM_LIMIT = _VMEM_CAP // 2        # scoped-VMEM cap handed to the compiler


def _round_up(a, b):
    return (a + b - 1) // b * b


def _choose_tile(n, max_tile):
    """Rows per grid block: <= max_tile, multiple of 8, dividing n when possible."""
    if n <= max_tile:
        return n                    # single full block (exempt from the (8,128) rule)
    max_tile = max(8, max_tile // 8 * 8)
    for t in range(max_tile, 7, -8):        # prefer a divisor -> no pad, no final slice
        if n % t == 0:
            return t
    return max_tile                 # fall back to padding + masked statistics


def _conv_tanh_channels(w_ref, b_ref, x, c_out, k_len, l_out):
    """tanh('valid' conv + bias) per output channel for one batch tile.

    The K shifted input slices are built once and shared by every channel; the k=0 term is
    folded into the bias init (one fewer add per element per channel).
    """
    accs = [b_ref[c] + w_ref[c, 0] * x[:, 0:l_out] for c in range(c_out)]
    # Fully unrolled VPU loop -- fine for K=8 / C_out=2.
    # TODO(synk): for large K*C_out reformulate as an im2col matmul on the MXU
    # (jnp.dot with preferred_element_type=jnp.float32); the MXU is idle in this kernel.
    for k in range(1, k_len):
        shifted = x[:, k:k + l_out]
        for c in range(c_out):
            accs[c] = accs[c] + w_ref[c, k] * shifted
    return [jnp.tanh(a) for a in accs]


# ----------------------------------------------------------------------------------------
# Fused path: conv + tanh + batch stats + normalize in ONE pallas_call.
# Output block is resident in VMEM across the batch grid (constant index_map), so the
# grid axis must be "arbitrary" (sequential); stats live in a (1,1) VMEM scratch.
# ----------------------------------------------------------------------------------------
def _make_fused_kernel(c_out, k_len, l_out, tn, nb, n_valid, need_mask):
    inv_total = 1.0 / float(n_valid * c_out * l_out)

    def kernel(w_ref, b_ref, x_ref, o_ref, s_acc, ss_acc):
        # w_ref: SMEM (c_out, K);  b_ref: SMEM (c_out,);  x_ref: VMEM (tn, L)
        # o_ref: VMEM (n_pad, row_w)  -- resident across the whole grid
        # s_acc / ss_acc: VMEM (1, 1) running sum / sum-of-squares
        i = pl.program_id(0)

        @pl.when(i == 0)
        def _():
            s_acc[...] = jnp.zeros_like(s_acc)
            ss_acc[...] = jnp.zeros_like(ss_acc)

        x = x_ref[...]                                             # (tn, L)
        ys = _conv_tanh_channels(w_ref, b_ref, x, c_out, k_len, l_out)

        # Write this batch tile's rows straight into the resident output slab.
        if nb > 1:
            row0 = pl.multiple_of(i * tn, 8)
        for c, y in enumerate(ys):
            col = slice(c * l_out, (c + 1) * l_out)
            if nb == 1:
                o_ref[:, col] = y
            else:
                o_ref[pl.ds(row0, tn), col] = y

        # Per-block (sum, sumsq); per-channel reduce to scalars immediately (low vreg
        # pressure).  Padded rows only exist in the last block, so only it pays the mask.
        def accumulate(mask_rows):
            s = jnp.zeros((1, 1), jnp.float32)
            ss = jnp.zeros((1, 1), jnp.float32)
            if mask_rows:
                rows = (jax.lax.broadcasted_iota(jnp.int32, (tn, l_out), 0) + i * tn)
                valid = rows < n_valid
            for y in ys:
                if mask_rows:
                    y = jnp.where(valid, y, 0.0)
                s = s + jnp.sum(y, axis=(0, 1), keepdims=True)
                ss = ss + jnp.sum(y * y, axis=(0, 1), keepdims=True)
            s_acc[...] = s_acc[...] + s
            ss_acc[...] = ss_acc[...] + ss

        if need_mask:
            pl.when(i != nb - 1)(lambda: accumulate(False))
            pl.when(i == nb - 1)(lambda: accumulate(True))
        else:
            accumulate(False)

        # Last step: biased batch stats, then normalize the resident slab in place.
        @pl.when(i == nb - 1)
        def _():
            mean = s_acc[...] * inv_total                          # (1,1)
            var = jnp.maximum(ss_acc[...] * inv_total - mean * mean, 0.0)
            inv = jax.lax.rsqrt(var + jnp.float32(_BN_EPS))
            if nb == 1:
                o_ref[...] = (o_ref[...] - mean) * inv
            else:
                @pl.loop(0, nb)                                    # block-by-block: keeps
                def _(j):                                          # live values at tile size
                    r0 = pl.multiple_of(j * tn, 8)
                    blk = o_ref[pl.ds(r0, tn), :]
                    o_ref[pl.ds(r0, tn), :] = (blk - mean) * inv

    return kernel


def _fused_forward(x2, w2, b1, n, c_out, k_len, l_out, tn, n_pad, need_mask):
    nb = n_pad // tn
    row_w = c_out * l_out
    l = x2.shape[1]
    return pl.pallas_call(
        _make_fused_kernel(c_out, k_len, l_out, tn, nb, n, need_mask),
        grid=(nb,),
        out_shape=jax.ShapeDtypeStruct((n_pad, row_w), jnp.float32),
        in_specs=[
            pl.BlockSpec(memory_space=pltpu.MemorySpace.SMEM),     # conv weight (scalars)
            pl.BlockSpec(memory_space=pltpu.MemorySpace.SMEM),     # conv bias   (scalars)
            pl.BlockSpec((tn, l), lambda i: (i, 0)),               # x batch tile -> VMEM
        ],
        out_specs=pl.BlockSpec((n_pad, row_w), lambda i: (0, 0)),  # resident output slab
        scratch_shapes=[pltpu.VMEM((1, 1), jnp.float32),           # running sum
                        pltpu.VMEM((1, 1), jnp.float32)],          # running sum of squares
        compiler_params=pltpu.CompilerParams(
            dimension_semantics=("arbitrary",),                    # accumulator-style grid
            vmem_limit_bytes=int(_VMEM_LIMIT)),
    )(w2, b1, x2)


# ----------------------------------------------------------------------------------------
# Fallback path (activation too big for VMEM): stats-only pass + recompute-and-normalize.
# ----------------------------------------------------------------------------------------
def _make_stats_kernel(c_out, k_len, l_out, tn, nb, n_valid, need_mask):
    def kernel(w_ref, b_ref, x_ref, stats_ref):
        # stats_ref: VMEM (1, 1, 2) = per-block [sum(y), sum(y*y)]
        x = x_ref[...]
        ys = _conv_tanh_channels(w_ref, b_ref, x, c_out, k_len, l_out)

        def write_stats(mask_rows):
            s = jnp.zeros((1, 1), jnp.float32)
            ss = jnp.zeros((1, 1), jnp.float32)
            if mask_rows:
                rows = (jax.lax.broadcasted_iota(jnp.int32, (tn, l_out), 0)
                        + pl.program_id(0) * tn)
                valid = rows < n_valid
            for y in ys:
                if mask_rows:
                    y = jnp.where(valid, y, 0.0)
                s = s + jnp.sum(y, axis=(0, 1), keepdims=True)
                ss = ss + jnp.sum(y * y, axis=(0, 1), keepdims=True)
            stats_ref[0, :, 0:1] = s
            stats_ref[0, :, 1:2] = ss

        if need_mask:
            pl.when(pl.program_id(0) != nb - 1)(lambda: write_stats(False))
            pl.when(pl.program_id(0) == nb - 1)(lambda: write_stats(True))
        else:
            write_stats(False)

    return kernel


def _make_norm_kernel(c_out, k_len, l_out):
    def kernel(mv_ref, w_ref, b_ref, x_ref, o_ref):
        # mv_ref: SMEM (2,) = [mean, inv_std]; recompute conv+tanh and write y exactly once
        x = x_ref[...]
        ys = _conv_tanh_channels(w_ref, b_ref, x, c_out, k_len, l_out)
        mean = mv_ref[0]
        inv = mv_ref[1]
        for c, y in enumerate(ys):
            o_ref[:, c * l_out:(c + 1) * l_out] = (y - mean) * inv

    return kernel


def _two_pass_forward(x2, w2, b1, n, c_out, k_len, l_out, tn, n_pad, need_mask):
    nb = n_pad // tn
    row_w = c_out * l_out
    l = x2.shape[1]

    stats = pl.pallas_call(
        _make_stats_kernel(c_out, k_len, l_out, tn, nb, n, need_mask),
        grid=(nb,),
        out_shape=jax.ShapeDtypeStruct((nb, 1, 2), jnp.float32),
        in_specs=[
            pl.BlockSpec(memory_space=pltpu.MemorySpace.SMEM),
            pl.BlockSpec(memory_space=pltpu.MemorySpace.SMEM),
            pl.BlockSpec((tn, l), lambda i: (i, 0)),
        ],
        out_specs=pl.BlockSpec((1, 1, 2), lambda i: (i, 0, 0)),
        compiler_params=pltpu.CompilerParams(
            # "parallel": independent blocks; on v7x this lets the 2 TCs split the batch.
            dimension_semantics=("parallel",),
            vmem_limit_bytes=int(_VMEM_LIMIT)),
    )(w2, b1, x2)

    # Tiny scalar reduction between the two passes.  This path is only taken when the
    # activation does not fit in VMEM (large N*L), where this few-us XLA fusion is
    # negligible; the small-N case is handled entirely by the fused kernel above.
    total = jnp.float32(n * c_out * l_out)
    s_tot = jnp.sum(stats[:, 0, 0])
    ss_tot = jnp.sum(stats[:, 0, 1])
    mean = s_tot / total
    var = jnp.maximum(ss_tot / total - mean * mean, 0.0)
    inv = jax.lax.rsqrt(var + jnp.float32(_BN_EPS))
    mv = jnp.stack([mean, inv]).astype(jnp.float32)

    out = pl.pallas_call(
        _make_norm_kernel(c_out, k_len, l_out),
        grid=(nb,),
        out_shape=jax.ShapeDtypeStruct((n_pad, row_w), jnp.float32),
        in_specs=[
            pl.BlockSpec(memory_space=pltpu.MemorySpace.SMEM),     # [mean, inv_std]
            pl.BlockSpec(memory_space=pltpu.MemorySpace.SMEM),     # conv weight
            pl.BlockSpec(memory_space=pltpu.MemorySpace.SMEM),     # conv bias
            pl.BlockSpec((tn, l), lambda i: (i, 0)),               # re-read x, recompute
        ],
        out_specs=pl.BlockSpec((tn, row_w), lambda i: (i, 0)),
        compiler_params=pltpu.CompilerParams(
            dimension_semantics=("parallel",),
            vmem_limit_bytes=int(_VMEM_LIMIT)),
    )(mv, w2, b1, x2)
    return out


# ----------------------------------------------------------------------------------------
# Public wrapper.
# ----------------------------------------------------------------------------------------
@functools.partial(jax.jit, static_argnames=("force_two_pass",))
def txnn_ffe_forward(x, weight, bias, force_two_pass=False):
    """x: (N, 1, L) NCL; weight: (C_out=2, 1, K); bias: (2,). Returns (N*C_out*L_out, 1)."""
    n, c_in, l = x.shape
    assert c_in == 1, "TxNN_FFE uses Conv1d(in_channels=1, ...)"
    c_out, _, k_len = weight.shape
    l_out = l - k_len + 1
    row_w = c_out * l_out

    x2 = x.reshape(n, l).astype(jnp.float32)
    w2 = weight.reshape(c_out, k_len).astype(jnp.float32)
    b1 = bias.reshape(c_out).astype(jnp.float32)

    def _fused_vmem_bytes(tile, rows):
        # 2x the resident output slab (conservative about output buffering), double-
        # buffered x blocks, and the live (tile, l_out) conv/tanh temporaries.
        return 4 * (2 * rows * row_w + 2 * tile * l + (c_out + 3) * tile * l_out)

    # ---- choose path & batch tile ----
    tn_f = _choose_tile(n, 1024)
    n_pad_f = _round_up(n, tn_f)
    use_fused = (not force_two_pass) and _fused_vmem_bytes(tn_f, n_pad_f) <= _FUSED_BUDGET

    if use_fused:
        tn, n_pad = tn_f, n_pad_f
    else:
        # Big blocks amortize the ~0.35 us/step pipeline overhead; cap so a step's working
        # set (x + out double-buffered + temporaries) stays well under scoped VMEM.
        per_row = 4 * (2 * l + 2 * row_w + (c_out + 2) * l_out)
        budget_rows = max(8, (_FUSED_BUDGET // 2) // max(per_row, 1))
        max_tile = max(8, min(2048, budget_rows) // 8 * 8)
        tn = _choose_tile(n, max_tile)
        n_pad = _round_up(n, tn)

    need_mask = n_pad != n
    if need_mask:
        x2 = jnp.pad(x2, ((0, n_pad - n), (0, 0)))

    if use_fused:
        out = _fused_forward(x2, w2, b1, n, c_out, k_len, l_out, tn, n_pad, need_mask)
    else:
        out = _two_pass_forward(x2, w2, b1, n, c_out, k_len, l_out, tn, n_pad, need_mask)

    if need_mask:
        out = out[:n]   # only reached when no multiple-of-8 divisor tile exists
    # (N, C_out*L_out) row-major == PyTorch's reshape(-1, out_dim).reshape(-1, 1) order.
    return out.reshape(-1, 1)


def txnn_ffe_reference(x, weight, bias):
    """Pure-JAX reference mirroring the PyTorch forward (training-mode batchnorm)."""
    y = jax.lax.conv_general_dilated(
        x.astype(jnp.float32), weight.astype(jnp.float32),
        window_strides=(1,), padding="VALID",
        dimension_numbers=("NCH", "OIH", "NCH"))
    y = y + bias.astype(jnp.float32)[None, :, None]
    y = y.reshape(-1, 1)
    y = jnp.tanh(y)
    mean = jnp.mean(y)
    var = jnp.mean((y - mean) ** 2)
    return (y - mean) / jnp.sqrt(var + _BN_EPS)


if __name__ == "__main__":
    seq_len = 8                      # R['TxNN_seqLen_Conv'] for this synthetic instance
    key = jax.random.PRNGKey(0)
    kw, kb, kx = jax.random.split(key, 3)
    weight = jax.random.normal(kw, (2, 1, seq_len), dtype=jnp.float32) * 0.3
    bias = jax.random.normal(kb, (2,), dtype=jnp.float32) * 0.1

    # 1) shipped small shape -> fused single-kernel path
    batch, length = 2, 16
    x = jax.random.normal(kx, (batch, 1, length), dtype=jnp.float32)
    out = jax.block_until_ready(txnn_ffe_forward(x, weight, bias))
    ref = txnn_ffe_reference(x, weight, bias)
    assert out.shape == ref.shape == (batch * 2 * (length - seq_len + 1), 1)
    assert jnp.allclose(out, ref, atol=1e-4, rtol=1e-4), (out, ref)

    # 2) same shape through the large-activation fallback (stats pass + recompute pass)
    out2 = jax.block_until_ready(txnn_ffe_forward(x, weight, bias, force_two_pass=True))
    assert jnp.allclose(out2, ref, atol=1e-4, rtol=1e-4)

    # 3) multi-block fused path with padding/masking (batch not divisible by the tile)
    big_batch = 1030
    xb = jax.random.normal(kx, (big_batch, 1, length), dtype=jnp.float32)
    outb = jax.block_until_ready(txnn_ffe_forward(xb, weight, bias))
    refb = txnn_ffe_reference(xb, weight, bias)
    assert outb.shape == refb.shape
    assert jnp.allclose(outb, refb, atol=1e-3, rtol=1e-3)

    print("KERNEL_OK")
</pallas_src>

<mosaic_0001>
module attributes {stable_mosaic.version = 11 : i64} {
  func.func @kernel(%arg0: i32, %arg1: memref<2x8xf32, #tpu.memory_space<smem>>, %arg2: memref<2xf32, #tpu.memory_space<smem>>, %arg3: memref<2x16xf32, #tpu.memory_space<vmem>>, %arg4: memref<2x18xf32, #tpu.memory_space<vmem>>, %arg5: memref<1x1xf32, #tpu.memory_space<vmem>>, %arg6: memref<1x1xf32, #tpu.memory_space<vmem>>) attributes {dimension_semantics = [#tpu.dimension_semantics<arbitrary>], iteration_bounds = array<i64: 1>, scalar_prefetch = 0 : i64, scratch_operands = 2 : i64, tpu.core_type = #tpu.core_type<tc>, window_params = [{transform_indices = @transform_0, window_bounds = array<i64: 2, 8>}, {transform_indices = @transform_1, window_bounds = array<i64: 2>}, {transform_indices = @transform_2, window_bounds = array<i64: 2, 16>}, {pipeline_mode = #tpu.pipeline_mode<synchronous>, transform_indices = @transform_3, window_bounds = array<i64: 2, 18>}]} {
    %c0_i32 = arith.constant 0 : i32
    %0 = arith.cmpi eq, %arg0, %c0_i32 : i32
    %1 = arith.extui %0 : i1 to i32
    %c0_i32_0 = arith.constant 0 : i32
    %2 = arith.cmpi ne, %1, %c0_i32_0 : i32
    scf.if %2 {
      %cst_47 = arith.constant 0.000000e+00 : f32
      %122 = vector.broadcast %cst_47 : f32 to vector<1x1xf32>
      %c0_48 = arith.constant 0 : index
      %c0_49 = arith.constant 0 : index
      %123 = vector.load %arg5[%c0_48, %c0_49] : memref<1x1xf32, #tpu.memory_space<vmem>>, vector<1x1xf32>
      tpu.vector_store %arg5[%c0_48, %c0_49], %122 {strides = array<i32>} : memref<1x1xf32, #tpu.memory_space<vmem>>, vector<1x1xf32>,
      %cst_50 = arith.constant 0.000000e+00 : f32
      %124 = vector.broadcast %cst_50 : f32 to vector<1x1xf32>
      %c0_51 = arith.constant 0 : index
      %c0_52 = arith.constant 0 : index
      %125 = vector.load %arg6[%c0_51, %c0_52] : memref<1x1xf32, #tpu.memory_space<vmem>>, vector<1x1xf32>
      tpu.vector_store %arg6[%c0_51, %c0_52], %124 {strides = array<i32>} : memref<1x1xf32, #tpu.memory_space<vmem>>, vector<1x1xf32>,
    } else {
    }
    %c0 = arith.constant 0 : index
    %c0_1 = arith.constant 0 : index
    %3 = vector.load %arg3[%c0, %c0_1] : memref<2x16xf32, #tpu.memory_space<vmem>>, vector<2x16xf32>
    %c0_2 = arith.constant 0 : index
    %4 = memref.load %arg2[%c0_2] : memref<2xf32, #tpu.memory_space<smem>>
    %c0_3 = arith.constant 0 : index
    %c0_4 = arith.constant 0 : index
    %5 = memref.load %arg1[%c0_3, %c0_4] : memref<2x8xf32, #tpu.memory_space<smem>>
    %6 = vector.extract_strided_slice %3 {offsets = [0, 0], sizes = [2, 9], strides = [1, 1]} : vector<2x16xf32> to vector<2x9xf32>
    %7 = vector.broadcast %5 : f32 to vector<2x9xf32>
    %8 = arith.mulf %7, %6 : vector<2x9xf32>
    %9 = vector.broadcast %4 : f32 to vector<2x9xf32>
    %10 = arith.addf %9, %8 : vector<2x9xf32>
    %c1 = arith.constant 1 : index
    %11 = memref.load %arg2[%c1] : memref<2xf32, #tpu.memory_space<smem>>
    %c1_5 = arith.constant 1 : index
    %c0_6 = arith.constant 0 : index
    %12 = memref.load %arg1[%c1_5, %c0_6] : memref<2x8xf32, #tpu.memory_space<smem>>
    %13 = vector.extract_strided_slice %3 {offsets = [0, 0], sizes = [2, 9], strides = [1, 1]} : vector<2x16xf32> to vector<2x9xf32>
    %14 = vector.broadcast %12 : f32 to vector<2x9xf32>
    %15 = arith.mulf %14, %13 : vector<2x9xf32>
    %16 = vector.broadcast %11 : f32 to vector<2x9xf32>
    %17 = arith.addf %16, %15 : vector<2x9xf32>
    %18 = vector.extract_strided_slice %3 {offsets = [0, 1], sizes = [2, 9], strides = [1, 1]} : vector<2x16xf32> to vector<2x9xf32>
    %c0_7 = arith.constant 0 : index
    %c1_8 = arith.constant 1 : index
    %19 = memref.load %arg1[%c0_7, %c1_8] : memref<2x8xf32, #tpu.memory_space<smem>>
    %20 = vector.broadcast %19 : f32 to vector<2x9xf32>
    %21 = arith.mulf %20, %18 : vector<2x9xf32>
    %22 = arith.addf %10, %21 : vector<2x9xf32>
    %c1_9 = arith.constant 1 : index
    %c1_10 = arith.constant 1 : index
    %23 = memref.load %arg1[%c1_9, %c1_10] : memref<2x8xf32, #tpu.memory_space<smem>>
    %24 = vector.broadcast %23 : f32 to vector<2x9xf32>
    %25 = arith.mulf %24, %18 : vector<2x9xf32>
    %26 = arith.addf %17, %25 : vector<2x9xf32>
    %27 = vector.extract_strided_slice %3 {offsets = [0, 2], sizes = [2, 9], strides = [1, 1]} : vector<2x16xf32> to vector<2x9xf32>
    %c0_11 = arith.constant 0 : index
    %c2 = arith.constant 2 : index
    %28 = memref.load %arg1[%c0_11, %c2] : memref<2x8xf32, #tpu.memory_space<smem>>
    %29 = vector.broadcast %28 : f32 to vector<2x9xf32>
    %30 = arith.mulf %29, %27 : vector<2x9xf32>
    %31 = arith.addf %22, %30 : vector<2x9xf32>
    %c1_12 = arith.constant 1 : index
    %c2_13 = arith.constant 2 : index
    %32 = memref.load %arg1[%c1_12, %c2_13] : memref<2x8xf32, #tpu.memory_space<smem>>
    %33 = vector.broadcast %32 : f32 to vector<2x9xf32>
    %34 = arith.mulf %33, %27 : vector<2x9xf32>
    %35 = arith.addf %26, %34 : vector<2x9xf32>
    %36 = vector.extract_strided_slice %3 {offsets = [0, 3], sizes = [2, 9], strides = [1, 1]} : vector<2x16xf32> to vector<2x9xf32>
    %c0_14 = arith.constant 0 : index
    %c3 = arith.constant 3 : index
    %37 = memref.load %arg1[%c0_14, %c3] : memref<2x8xf32, #tpu.memory_space<smem>>
    %38 = vector.broadcast %37 : f32 to vector<2x9xf32>
    %39 = arith.mulf %38, %36 : vector<2x9xf32>
    %40 = arith.addf %31, %39 : vector<2x9xf32>
    %c1_15 = arith.constant 1 : index
    %c3_16 = arith.constant 3 : index
    %41 = memref.load %arg1[%c1_15, %c3_16] : memref<2x8xf32, #tpu.memory_space<smem>>
    %42 = vector.broadcast %41 : f32 to vector<2x9xf32>
    %43 = arith.mulf %42, %36 : vector<2x9xf32>
    %44 = arith.addf %35, %43 : vector<2x9xf32>
    %45 = vector.extract_strided_slice %3 {offsets = [0, 4], sizes = [2, 9], strides = [1, 1]} : vector<2x16xf32> to vector<2x9xf32>
    %c0_17 = arith.constant 0 : index
    %c4 = arith.constant 4 : index
    %46 = memref.load %arg1[%c0_17, %c4] : memref<2x8xf32, #tpu.memory_space<smem>>
    %47 = vector.broadcast %46 : f32 to vector<2x9xf32>
    %48 = arith.mulf %47, %45 : vector<2x9xf32>
    %49 = arith.addf %40, %48 : vector<2x9xf32>
    %c1_18 = arith.constant 1 : index
    %c4_19 = arith.constant 4 : index
    %50 = memref.load %arg1[%c1_18, %c4_19] : memref<2x8xf32, #tpu.memory_space<smem>>
    %51 = vector.broadcast %50 : f32 to vector<2x9xf32>
    %52 = arith.mulf %51, %45 : vector<2x9xf32>
    %53 = arith.addf %44, %52 : vector<2x9xf32>
    %54 = vector.extract_strided_slice %3 {offsets = [0, 5], sizes = [2, 9], strides = [1, 1]} : vector<2x16xf32> to vector<2x9xf32>
    %c0_20 = arith.constant 0 : index
    %c5 = arith.constant 5 : index
    %55 = memref.load %arg1[%c0_20, %c5] : memref<2x8xf32, #tpu.memory_space<smem>>
    %56 = vector.broadcast %55 : f32 to vector<2x9xf32>
    %57 = arith.mulf %56, %54 : vector<2x9xf32>
    %58 = arith.addf %49, %57 : vector<2x9xf32>
    %c1_21 = arith.constant 1 : index
    %c5_22 = arith.constant 5 : index
    %59 = memref.load %arg1[%c1_21, %c5_22] : memref<2x8xf32, #tpu.memory_space<smem>>
    %60 = vector.broadcast %59 : f32 to vector<2x9xf32>
    %61 = arith.mulf %60, %54 : vector<2x9xf32>
    %62 = arith.addf %53, %61 : vector<2x9xf32>
    %63 = vector.extract_strided_slice %3 {offsets = [0, 6], sizes = [2, 9], strides = [1, 1]} : vector<2x16xf32> to vector<2x9xf32>
    %c0_23 = arith.constant 0 : index
    %c6 = arith.constant 6 : index
    %64 = memref.load %arg1[%c0_23, %c6] : memref<2x8xf32, #tpu.memory_space<smem>>
    %65 = vector.broadcast %64 : f32 to vector<2x9xf32>
    %66 = arith.mulf %65, %63 : vector<2x9xf32>
    %67 = arith.addf %58, %66 : vector<2x9xf32>
    %c1_24 = arith.constant 1 : index
    %c6_25 = arith.constant 6 : index
    %68 = memref.load %arg1[%c1_24, %c6_25] : memref<2x8xf32, #tpu.memory_space<smem>>
    %69 = vector.broadcast %68 : f32 to vector<2x9xf32>
    %70 = arith.mulf %69, %63 : vector<2x9xf32>
    %71 = arith.addf %62, %70 : vector<2x9xf32>
    %72 = vector.extract_strided_slice %3 {offsets = [0, 7], sizes = [2, 9], strides = [1, 1]} : vector<2x16xf32> to vector<2x9xf32>
    %c0_26 = arith.constant 0 : index
    %c7 = arith.constant 7 : index
    %73 = memref.load %arg1[%c0_26, %c7] : memref<2x8xf32, #tpu.memory_space<smem>>
    %74 = vector.broadcast %73 : f32 to vector<2x9xf32>
    %75 = arith.mulf %74, %72 : vector<2x9xf32>
    %76 = arith.addf %67, %75 : vector<2x9xf32>
    %c1_27 = arith.constant 1 : index
    %c7_28 = arith.constant 7 : index
    %77 = memref.load %arg1[%c1_27, %c7_28] : memref<2x8xf32, #tpu.memory_space<smem>>
    %78 = vector.broadcast %77 : f32 to vector<2x9xf32>
    %79 = arith.mulf %78, %72 : vector<2x9xf32>
    %80 = arith.addf %71, %79 : vector<2x9xf32>
    %81 = math.tanh %76 : vector<2x9xf32>
    %82 = math.tanh %80 : vector<2x9xf32>
    %c0_29 = arith.constant 0 : index
    %c0_30 = arith.constant 0 : index
    %83 = vector.load %arg4[%c0_29, %c0_30] : memref<2x18xf32, #tpu.memory_space<vmem>>, vector<2x9xf32>
    tpu.vector_store %arg4[%c0_29, %c0_30], %81 {strides = array<i32>} : memref<2x18xf32, #tpu.memory_space<vmem>>, vector<2x9xf32>,
    %c0_31 = arith.constant 0 : index
    %c9 = arith.constant 9 : index
    %84 = vector.load %arg4[%c0_31, %c9] : memref<2x18xf32, #tpu.memory_space<vmem>>, vector<2x9xf32>
    tpu.vector_store %arg4[%c0_31, %c9], %82 {strides = array<i32>} : memref<2x18xf32, #tpu.memory_space<vmem>>, vector<2x9xf32>,
    %cst = arith.constant 0.000000e+00 : f32
    %85 = vector.broadcast %cst : f32 to vector<1x1xf32>
    %cst_32 = arith.constant 0.000000e+00 : f32
    %86 = vector.broadcast %cst_32 : f32 to vector<1x1xf32>
    %87 = vector.shape_cast %81 : vector<2x9xf32> to vector<1x2x9xf32>
    %cst_33 = arith.constant dense<0.000000e+00> : vector<1xf32>
    %88 = vector.multi_reduction <add>, %87, %cst_33 [1, 2] : vector<1x2x9xf32> to vector<1xf32>
    %89 = vector.shape_cast %88 : vector<1xf32> to vector<1x1x1xf32>
    %90 = vector.extract %89[0, 0, 0] : f32 from vector<1x1x1xf32>
    %91 = vector.broadcast %90 : f32 to vector<1x1xf32>
    %92 = arith.addf %85, %91 : vector<1x1xf32>
    %93 = arith.mulf %81, %81 : vector<2x9xf32>
    %94 = vector.shape_cast %93 : vector<2x9xf32> to vector<1x2x9xf32>
    %cst_34 = arith.constant dense<0.000000e+00> : vector<1xf32>
    %95 = vector.multi_reduction <add>, %94, %cst_34 [1, 2] : vector<1x2x9xf32> to vector<1xf32>
    %96 = vector.shape_cast %95 : vector<1xf32> to vector<1x1x1xf32>
    %97 = vector.extract %96[0, 0, 0] : f32 from vector<1x1x1xf32>
    %98 = vector.broadcast %97 : f32 to vector<1x1xf32>
    %99 = arith.addf %86, %98 : vector<1x1xf32>
    %100 = vector.shape_cast %82 : vector<2x9xf32> to vector<1x2x9xf32>
    %cst_35 = arith.constant dense<0.000000e+00> : vector<1xf32>
    %101 = vector.multi_reduction <add>, %100, %cst_35 [1, 2] : vector<1x2x9xf32> to vector<1xf32>
    %102 = vector.shape_cast %101 : vector<1xf32> to vector<1x1x1xf32>
    %103 = vector.extract %102[0, 0, 0] : f32 from vector<1x1x1xf32>
    %104 = vector.broadcast %103 : f32 to vector<1x1xf32>
    %105 = arith.addf %92, %104 : vector<1x1xf32>
    %106 = arith.mulf %82, %82 : vector<2x9xf32>
    %107 = vector.shape_cast %106 : vector<2x9xf32> to vector<1x2x9xf32>
    %cst_36 = arith.constant dense<0.000000e+00> : vector<1xf32>
    %108 = vector.multi_reduction <add>, %107, %cst_36 [1, 2] : vector<1x2x9xf32> to vector<1xf32>
    %109 = vector.shape_cast %108 : vector<1xf32> to vector<1x1x1xf32>
    %110 = vector.extract %109[0, 0, 0] : f32 from vector<1x1x1xf32>
    %111 = vector.broadcast %110 : f32 to vector<1x1xf32>
    %112 = arith.addf %99, %111 : vector<1x1xf32>
    %c0_37 = arith.constant 0 : index
    %c0_38 = arith.constant 0 : index
    %113 = vector.load %arg5[%c0_37, %c0_38] : memref<1x1xf32, #tpu.memory_space<vmem>>, vector<1x1xf32>
    %114 = arith.addf %113, %105 : vector<1x1xf32>
    %c0_39 = arith.constant 0 : index
    %c0_40 = arith.constant 0 : index
    %115 = vector.load %arg5[%c0_39, %c0_40] : memref<1x1xf32, #tpu.memory_space<vmem>>, vector<1x1xf32>
    tpu.vector_store %arg5[%c0_39, %c0_40], %114 {strides = array<i32>} : memref<1x1xf32, #tpu.memory_space<vmem>>, vector<1x1xf32>,
    %c0_41 = arith.constant 0 : index
    %c0_42 = arith.constant 0 : index
    %116 = vector.load %arg6[%c0_41, %c0_42] : memref<1x1xf32, #tpu.memory_space<vmem>>, vector<1x1xf32>
    %117 = arith.addf %116, %112 : vector<1x1xf32>
    %c0_43 = arith.constant 0 : index
    %c0_44 = arith.constant 0 : index
    %118 = vector.load %arg6[%c0_43, %c0_44] : memref<1x1xf32, #tpu.memory_space<vmem>>, vector<1x1xf32>
    tpu.vector_store %arg6[%c0_43, %c0_44], %117 {strides = array<i32>} : memref<1x1xf32, #tpu.memory_space<vmem>>, vector<1x1xf32>,
    %c0_i32_45 = arith.constant 0 : i32
    %119 = arith.cmpi eq, %arg0, %c0_i32_45 : i32
    %120 = arith.extui %119 : i1 to i32
    %c0_i32_46 = arith.constant 0 : i32
    %121 = arith.cmpi ne, %120, %c0_i32_46 : i32
    scf.if %121 {
      %c0_47 = arith.constant 0 : index
      %c0_48 = arith.constant 0 : index
      %122 = vector.load %arg5[%c0_47, %c0_48] : memref<1x1xf32, #tpu.memory_space<vmem>>, vector<1x1xf32>
      %cst_49 = arith.constant 0.027777778 : f32
      %123 = vector.broadcast %cst_49 : f32 to vector<1x1xf32>
      %124 = arith.mulf %122, %123 : vector<1x1xf32>
      %c0_50 = arith.constant 0 : index
      %c0_51 = arith.constant 0 : index
      %125 = vector.load %arg6[%c0_50, %c0_51] : memref<1x1xf32, #tpu.memory_space<vmem>>, vector<1x1xf32>
      %cst_52 = arith.constant 0.027777778 : f32
      %126 = vector.broadcast %cst_52 : f32 to vector<1x1xf32>
      %127 = arith.mulf %125, %126 : vector<1x1xf32>
      %128 = arith.mulf %124, %124 : vector<1x1xf32>
      %129 = arith.subf %127, %128 : vector<1x1xf32>
      %cst_53 = arith.constant 0.000000e+00 : f32
      %130 = vector.broadcast %cst_53 : f32 to vector<1x1xf32>
      %131 = arith.maximumf %129, %130 : vector<1x1xf32>
      %cst_54 = arith.constant 9.99999974E-6 : f32
      %132 = vector.broadcast %cst_54 : f32 to vector<1x1xf32>
      %133 = arith.addf %131, %132 : vector<1x1xf32>
      %134 = math.rsqrt %133 : vector<1x1xf32>
      %c0_55 = arith.constant 0 : index
      %c0_56 = arith.constant 0 : index
      %135 = vector.load %arg4[%c0_55, %c0_56] : memref<2x18xf32, #tpu.memory_space<vmem>>, vector<2x18xf32>
      %136 = vector.broadcast %124 : vector<1x1xf32> to vector<2x18xf32>
      %137 = arith.subf %135, %136 : vector<2x18xf32>
      %138 = vector.broadcast %134 : vector<1x1xf32> to vector<2x18xf32>
      %139 = arith.mulf %137, %138 : vector<2x18xf32>
      %c0_57 = arith.constant 0 : index
      %c0_58 = arith.constant 0 : index
      %140 = vector.load %arg4[%c0_57, %c0_58] : memref<2x18xf32, #tpu.memory_space<vmem>>, vector<2x18xf32>
      tpu.vector_store %arg4[%c0_57, %c0_58], %139 {strides = array<i32>} : memref<2x18xf32, #tpu.memory_space<vmem>>, vector<2x18xf32>,
    } else {
    }
    return
  }
  func.func @transform_0(%arg0: i32) -> (i32, i32) {
    %c0_i32 = arith.constant 0 : i32
    %c0_i32_0 = arith.constant 0 : i32
    %c0_i32_1 = arith.constant 0 : i32
    return %c0_i32, %c0_i32_0 : i32, i32
  }
  func.func @transform_1(%arg0: i32) -> i32 {
    %c0_i32 = arith.constant 0 : i32
    %c0_i32_0 = arith.constant 0 : i32
    return %c0_i32 : i32
  }
  func.func @transform_2(%arg0: i32) -> (i32, i32) {
    %c0_i32 = arith.constant 0 : i32
    %c0_i32_0 = arith.constant 0 : i32
    return %arg0, %c0_i32 : i32, i32
  }
  func.func @transform_3(%arg0: i32) -> (i32, i32) {
    %c0_i32 = arith.constant 0 : i32
    %c0_i32_0 = arith.constant 0 : i32
    %c0_i32_1 = arith.constant 0 : i32
    return %c0_i32, %c0_i32_0 : i32, i32
  }
}

</mosaic_0001>

<llo_original>
// kernel: txnn_ffe_forward.1
$region0: #{txnn_ffe_forward.1}
  #allocation0 [shape = 'u32[]', space=smem, size = 0x4, offset = 0x4, fixed_abs, tag = 'smem constant byte address 0x4 - core index']
  #allocation1 [shape = 'u32[144,128]{1,0:T(1,128)}', space=vmem, size = 0x12000, scoped, tag = 'internal scratch']
  #allocation2 [shape = 'f32[1,1]{1,0:T(1,128)}', space=vmem, size = 0x200, scoped, tag = 'scratch operand']
  #allocation3 [shape = 'f32[1,1]{1,0:T(1,128)}', space=vmem, size = 0x200, scoped, tag = 'scratch operand']
  %s0 = inlined_call_operand.vmem [shape: f32[2,8], index: 0, kind: input, shape index: {}]
  %s1 = inlined_call_operand.vmem [shape: f32[2], index: 1, kind: input, shape index: {}]
  %s2 = inlined_call_operand.hbm [shape: f32[2,16], index: 2, kind: input, shape index: {}]
  %s3 = inlined_call_operand.vmem [shape: f32[2,18], index: 3, kind: output, shape index: {}]
  %s4 = sld [smem:[#allocation0]]
  $region42: #{txnn_ffe_forward.1} parent=0
    _
  %s6 = ssub.s32 1, %s4
  %s7 = scalar_select 0, %s6, %s4
  $region1: #{txnn_ffe_forward.1} parent=0
    #allocation4 [shape = 'u8[1024]{0}', space=smem, size = 0x400, scoped, tag = 'input window, operand 0, single buffered']
    #allocation5 [shape = 's32[1]{0}', space=sflag, size = 0x4, scoped, tag = 'scoped memory for txnn_ffe_forward.1']
    #allocation6 [shape = 's32[1]{0}', space=sflag, size = 0x4, scoped, tag = 'scoped memory for txnn_ffe_forward.1']
    #allocation7 [shape = 'u8[512]{0}', space=smem, size = 0x200, scoped, tag = 'input window, operand 1, single buffered']
    #allocation8 [shape = 's32[1]{0}', space=sflag, size = 0x4, scoped, tag = 'scoped memory for txnn_ffe_forward.1']
    #allocation9 [shape = 'u8[1024]{0}', space=vmem, size = 0x400, scoped, tag = 'input window, operand 2, single buffered']
    %8 = vsyncpa [#allocation6], 0
    %9 = vsyncpa [#allocation8], 0
    %10 = vsyncpa [#allocation5], 0
    // Predicated region
    $region2: #{txnn_ffe_forward.1} parent=1 // pred_check
      _
    $region3: #{txnn_ffe_forward.1} parent=1 // pred_check_branch
      %12 = sbr.rel (0) target = $region5
    $region4: #{txnn_ffe_forward.1} parent=1 // pred_region
      %s14 = ssub.s32 32, 32
      %15 = vsyncadd [#allocation6], %s14
      %s17 = sshll.u32 %s0, 4
      %s18 = int_to_ptr.vmem [resolvable:$true] %s17
      %20 = dma.vmem_to_smem %s18, 32, [#allocation4], [#allocation6]
    $region5: #{txnn_ffe_forward.1} parent=1 // pred_fallthru
      _
    // Predicated region
    $region6: #{txnn_ffe_forward.1} parent=1 // pred_check
      _
    $region7: #{txnn_ffe_forward.1} parent=1 // pred_check_branch
      %22 = sbr.rel (0) target = $region9
    $region8: #{txnn_ffe_forward.1} parent=1 // pred_region
      %s24 = ssub.s32 16, 16
      %25 = vsyncadd [#allocation8], %s24
      %s27 = sshll.u32 %s1, 4
      %s28 = int_to_ptr.vmem [resolvable:$true] %s27
      %30 = dma.vmem_to_smem %s28, 16, [#allocation7], [#allocation8]
    $region9: #{txnn_ffe_forward.1} parent=1 // pred_fallthru
      _
    // Predicated region
    $region10: #{txnn_ffe_forward.1} parent=1 // pred_check
      _
    $region11: #{txnn_ffe_forward.1} parent=1 // pred_check_branch
      %32 = sbr.rel (0) target = $region13
    $region12: #{txnn_ffe_forward.1} parent=1 // pred_region
      %s34 = ssub.s32 32, 32
      %35 = vsyncadd [#allocation5], %s34
      %s37 = sshll.u32 [#allocation9], 4
      %s38 = int_to_ptr.vmem [resolvable:$true] %s37
      %40 = dma.hbm_to_vmem [thread:$0]  %s2, 32, %s38, [#allocation5]
    $region13: #{txnn_ffe_forward.1} parent=1 // pred_fallthru
      _
    // Predicated region
    $region14: #{txnn_ffe_forward.1} parent=1 // pred_check
      _
    $region15: #{txnn_ffe_forward.1} parent=1 // pred_check_branch
      %42 = sbr.rel (0) target = $region17
    $region16: #{txnn_ffe_forward.1} parent=1 // pred_region
      %43 = dma.done [#allocation6], 32
    $region17: #{txnn_ffe_forward.1} parent=1 // pred_fallthru
      _
    // Predicated region
    $region18: #{txnn_ffe_forward.1} parent=1 // pred_check
      _
    $region19: #{txnn_ffe_forward.1} parent=1 // pred_check_branch
      %45 = sbr.rel (0) target = $region21
    $region20: #{txnn_ffe_forward.1} parent=1 // pred_region
      %46 = dma.done [#allocation8], 16
    $region21: #{txnn_ffe_forward.1} parent=1 // pred_fallthru
      _
    // Predicated region
    $region22: #{txnn_ffe_forward.1} parent=1 // pred_check
      _
    $region23: #{txnn_ffe_forward.1} parent=1 // pred_check_branch
      %48 = sbr.rel (0) target = $region25
    $region24: #{txnn_ffe_forward.1} parent=1 // pred_region
      %49 = dma.done [#allocation5], 32
    $region25: #{txnn_ffe_forward.1} parent=1 // pred_fallthru
      _
    %50 = sfence
    %p51 = scmp.eq.s32.totalorder 0, 0
    // Predicated region
    $region26: #{txnn_ffe_forward.1} parent=1 // pred_check
      %p52 = pneg %p51
    $region27: #{txnn_ffe_forward.1} parent=1 // pred_check_branch
      %54 = sbr.rel (%p52) target = $region29
    $region28: #{txnn_ffe_forward.1} parent=1 // pred_region
      %vm55 = vcmask 0
      %56 = vst.msk [vmem:[#allocation2] sm:$0x1] %vm55, 0.0
      %57 = vst.msk [vmem:[#allocation3] sm:$0x1] %vm55, 0.0
    $region29: #{txnn_ffe_forward.1} parent=1 // pred_fallthru
      _
    %v58 = vld [vmem:[#allocation9] sm:$0x3]
    %s59 = sld [smem:[#allocation7]]
    %s60 = sld [smem:[#allocation4]]
    %v61 = vstv %s60
    %v62 = vmul.f32 %v61, %v58
    %v63 = vstv %s59
    %v64 = vadd.f32 %v63, %v62
    %s65 = sld [smem:[#allocation7 + $0x1]]
    %s66 = sld [smem:[#allocation4 + $0x80]]
    %v67 = vstv %s66
    %v68 = vmul.f32 %v67, %v58
    %v69 = vstv %s65
    %v70 = vadd.f32 %v69, %v68
    %s71 = sld [smem:[#allocation4 + $0x1]]
    %v72 = vstv %s71
    %v73 = vmul.f32 %v72, %v58
    %75 = vrot.lane.b32.xlu0 %v73, 127
    %v76 = vpop.permute.xlu0 %75
    %v78 = vadd.f32 %v64, %v76
    %s79 = sld [smem:[#allocation4 + $0x81]]
    %v80 = vstv %s79
    %v81 = vmul.f32 %v80, %v58
    %83 = vrot.lane.b32.xlu0 %v81, 127
    %v84 = vpop.permute.xlu0 %83
    %v86 = vadd.f32 %v70, %v84
    %s87 = sld [smem:[#allocation4 + $0x2]]
    %v88 = vstv %s87
    %v89 = vmul.f32 %v88, %v58
    %91 = vrot.lane.b32.xlu0 %v89, 126
    %v92 = vpop.permute.xlu0 %91
    %v94 = vadd.f32 %v78, %v92
    %s95 = sld [smem:[#allocation4 + $0x82]]
    %v96 = vstv %s95
    %v97 = vmul.f32 %v96, %v58
    %99 = vrot.lane.b32.xlu0 %v97, 126
    %v100 = vpop.permute.xlu0 %99
    %v102 = vadd.f32 %v86, %v100
    %s103 = sld [smem:[#allocation4 + $0x3]]
    %v104 = vstv %s103
    %v105 = vmul.f32 %v104, %v58
    %107 = vrot.lane.b32.xlu0 %v105, 125
    %v108 = vpop.permute.xlu0 %107
    %v110 = vadd.f32 %v94, %v108
    %s111 = sld [smem:[#allocation4 + $0x83]]
    %v112 = vstv %s111
    %v113 = vmul.f32 %v112, %v58
    %115 = vrot.lane.b32.xlu0 %v113, 125
    %v116 = vpop.permute.xlu0 %115
    %v118 = vadd.f32 %v102, %v116
    %s119 = sld [smem:[#allocation4 + $0x4]]
    %v120 = vstv %s119
    %v121 = vmul.f32 %v120, %v58
    %123 = vrot.lane.b32.xlu0 %v121, 124
    %v124 = vpop.permute.xlu0 %123
    %v126 = vadd.f32 %v110, %v124
    %s127 = sld [smem:[#allocation4 + $0x84]]
    %v128 = vstv %s127
    %v129 = vmul.f32 %v128, %v58
    %131 = vrot.lane.b32.xlu0 %v129, 124
    %v132 = vpop.permute.xlu0 %131
    %v134 = vadd.f32 %v118, %v132
    %s135 = sld [smem:[#allocation4 + $0x5]]
    %v136 = vstv %s135
    %v137 = vmul.f32 %v136, %v58
    %139 = vrot.lane.b32.xlu0 %v137, 123
    %v140 = vpop.permute.xlu0 %139
    %v142 = vadd.f32 %v126, %v140
    %s143 = sld [smem:[#allocation4 + $0x85]]
    %v144 = vstv %s143
    %v145 = vmul.f32 %v144, %v58
    %147 = vrot.lane.b32.xlu0 %v145, 123
    %v148 = vpop.permute.xlu0 %147
    %v150 = vadd.f32 %v134, %v148
    %s151 = sld [smem:[#allocation4 + $0x6]]
    %v152 = vstv %s151
    %v153 = vmul.f32 %v152, %v58
    %155 = vrot.lane.b32.xlu0 %v153, 122
    %v156 = vpop.permute.xlu0 %155
    %v158 = vadd.f32 %v142, %v156
    %s159 = sld [smem:[#allocation4 + $0x86]]
    %v160 = vstv %s159
    %v161 = vmul.f32 %v160, %v58
    %163 = vrot.lane.b32.xlu0 %v161, 122
    %v164 = vpop.permute.xlu0 %163
    %v166 = vadd.f32 %v150, %v164
    %s167 = sld [smem:[#allocation4 + $0x7]]
    %v168 = vstv %s167
    %v169 = vmul.f32 %v168, %v58
    %171 = vrot.lane.b32.xlu0 %v169, 121
    %v172 = vpop.permute.xlu0 %171
    %v174 = vadd.f32 %v158, %v172
    %s175 = sld [smem:[#allocation4 + $0x87]]
    %v176 = vstv %s175
    %v177 = vmul.f32 %v176, %v58
    %179 = vrot.lane.b32.xlu0 %v177, 121
    %v180 = vpop.permute.xlu0 %179
    %v182 = vadd.f32 %v166, %v180
    %v183 = vtanh.pop %v174
    %v184 = vtanh.pop %v182
    %vm185 = vcmask 66560
    %186 = vst.msk [vmem:[%s3] sm:$0x3] %vm185, %v183
    %188 = vrot.lane.b32.xlu0 %v184, 9
    %v189 = vpop.permute.xlu0 %188
    %vm191 = vcmask 140360
    %192 = vst.msk [vmem:[%s3] sm:$0x3] %vm191, %v189
    %v193 = vsel %vm185, %v183, 0.0
    %194 = vadd.xlane.f32.xlu0 %v193
    %v195 = vpop.xlane.xlu0 %194
    %v196 = vrot.slane %v195, 4
    %v197 = vadd.f32 %v195, %v196
    %v198 = vrot.slane %v197, 2
    %v199 = vadd.f32 %v197, %v198
    %v200 = vrot.slane %v199, 1
    %v201 = vadd.f32 %v199, %v200
    %s202 = vtos %v201
    %v203 = vstv %s202
    %v204 = vadd.f32 %v203, 0.0
    %v205 = vmul.f32 %v183, %v183
    %v206 = vsel %vm185, %v205, 0.0
    %207 = vadd.xlane.f32.xlu0 %v206
    %v208 = vpop.xlane.xlu0 %207
    %v209 = vrot.slane %v208, 4
    %v210 = vadd.f32 %v208, %v209
    %v211 = vrot.slane %v210, 2
    %v212 = vadd.f32 %v210, %v211
    %v213 = vrot.slane %v212, 1
    %v214 = vadd.f32 %v212, %v213
    %s215 = vtos %v214
    %v216 = vstv %s215
    %v217 = vadd.f32 %v216, 0.0
    %v218 = vsel %vm185, %v184, 0.0
    %219 = vadd.xlane.f32.xlu0 %v218
    %v220 = vpop.xlane.xlu0 %219
    %v221 = vrot.slane %v220, 4
    %v222 = vadd.f32 %v220, %v221
    %v223 = vrot.slane %v222, 2
    %v224 = vadd.f32 %v222, %v223
    %v225 = vrot.slane %v224, 1
    %v226 = vadd.f32 %v224, %v225
    %s227 = vtos %v226
    %v228 = vstv %s227
    %v229 = vadd.f32 %v204, %v228
    %v230 = vmul.f32 %v184, %v184
    %v231 = vsel %vm185, %v230, 0.0
    %232 = vadd.xlane.f32.xlu0 %v231
    %v233 = vpop.xlane.xlu0 %232
    %v234 = vrot.slane %v233, 4
    %v235 = vadd.f32 %v233, %v234
    %v236 = vrot.slane %v235, 2
    %v237 = vadd.f32 %v235, %v236
    %v238 = vrot.slane %v237, 1
    %v239 = vadd.f32 %v237, %v238
    %s240 = vtos %v239
    %v241 = vstv %s240
    %v242 = vadd.f32 %v217, %v241
    %v243 = vld [vmem:[#allocation2] sm:$0x1]
    %v244 = vadd.f32 %v243, %v229
    %vm245 = vcmask 0
    %246 = vst.msk [vmem:[#allocation2] sm:$0x1] %vm245, %v244
    %v247 = vld [vmem:[#allocation3] sm:$0x1]
    %v248 = vadd.f32 %v247, %v242
    %249 = vst.msk [vmem:[#allocation3] sm:$0x1] %vm245, %v248
    // Predicated region
    $region30: #{txnn_ffe_forward.1} parent=1 // pred_check
      %p250 = pneg %p51
    $region31: #{txnn_ffe_forward.1} parent=1 // pred_check_branch
      %252 = sbr.rel (%p250) target = $region33
    $region32: #{txnn_ffe_forward.1} parent=1 // pred_region
      %v253 = vld [vmem:[#allocation2] sm:$0x1]
      %v254 = vmul.f32 %v253, 0.027777778
      %v255 = vld [vmem:[#allocation3] sm:$0x1]
      %v256 = vmul.f32 %v255, 0.027777778
      %v257 = vmul.f32 %v254, %v254
      %v258 = vsub.f32 %v256, %v257
      %v259 = vmax.f32 %v258, 0.0
      %v260 = vadd.f32 %v259, 1e-05
      %v261 = vrsqrt.pop %v260
      %v262 = vld [vmem:[%s3] sm:$0x3]
      %v264 = vlaneseq
      %v265 = vshrl.u32 %v264, 7
      %v266 = vsub.s32 0, %v265
      %v267 = vrot.slane %v254, %v266
      %268 = vset.pattern.permute.xlu0 0
      %269 = vperm.xlu0 %268, %v267
      %v270 = vpop.permute.xlu0 %269
      %v272 = vsub.f32 %v262, %v270
      %v274 = vlaneseq
      %v275 = vshrl.u32 %v274, 7
      %v276 = vsub.s32 0, %v275
      %v277 = vrot.slane %v261, %v276
      %278 = vset.pattern.permute.xlu0 0
      %279 = vperm.xlu0 %278, %v277
      %v280 = vpop.permute.xlu0 %279
      %v282 = vmul.f32 %v272, %v280
      %vm283 = vcmask 140288
      %284 = vst.msk [vmem:[%s3] sm:$0x3] %vm283, %v282
    $region33: #{txnn_ffe_forward.1} parent=1 // pred_fallthru
      _
    // Predicated region
    $region34: #{txnn_ffe_forward.1} parent=1 // pred_check
      _
    $region35: #{txnn_ffe_forward.1} parent=1 // pred_check_branch
      %286 = sbr.rel (0) target = $region37
    $region36: #{txnn_ffe_forward.1} parent=1 // pred_region
      _
    $region37: #{txnn_ffe_forward.1} parent=1 // pred_fallthru
      _
    // Predicated region
    $region38: #{txnn_ffe_forward.1} parent=1 // pred_check
      _
    $region39: #{txnn_ffe_forward.1} parent=1 // pred_check_branch
      %288 = sbr.rel (0) target = $region41
    $region40: #{txnn_ffe_forward.1} parent=1 // pred_region
      _
    $region41: #{txnn_ffe_forward.1} parent=1 // pred_fallthru
      _
    %289 = vsyncpa [#allocation5], 1
    %290 = vsyncpa [#allocation6], 1
    %291 = vsyncpa [#allocation8], 1

</llo_original>
